<compile_context>
chip_gen: v7x
topology: tpu7x:2x2x1
jax: 0.10.0
libtpu: 0.0.40
codegen_flags: <defaults>
</compile_context>

<pallas_src>
import math
from functools import partial

import jax
import jax.numpy as jnp
from jax import lax
from jax.experimental import pallas as pl
from jax.experimental.pallas import tpu as pltpu


# ----------------------------- Fused Pallas kernel -----------------------------

def _fused_vit_attn_kernel(x_ref, wqkv_ref, bqkv_ref, o_ref, *,
                           batch_block, num_heads, head_size, compute_dtype):
    """One block of `batch_block` batch elements per grid step.

    x_ref:    (B_blk, S, D)   hidden states (compute_dtype, e.g. bf16)
    wqkv_ref: (D, 3N)         fused [Wq*scale | Wk | Wv], pre-transposed
    bqkv_ref: (1, 3N)         fused [bq*scale, bk, bv] (f32)
    o_ref:    (B_blk, S, N)   merged-head context, N = H * Dh (f32)
    """
    N = num_heads * head_size
    _, S, D = x_ref.shape

    # ---- fused QKV projection for all batch elements of this block ----
    # Leading-axis merge is layout-free; the matmul is canonical (M,K)x(K,N).
    x = x_ref[...].reshape(batch_block * S, D)
    qkv = jnp.dot(x, wqkv_ref[...], preferred_element_type=jnp.float32)
    qkv = qkv + bqkv_ref[...]                                  # (B_blk*S, 3N) f32

    # ---- per-(batch, head) attention; context stored per head (no concat) ----
    for b in range(batch_block):
        r0 = b * S
        for h in range(num_heads):
            lo = h * head_size
            hi = lo + head_size
            qh = qkv[r0:r0 + S, lo:hi].astype(compute_dtype)            # (S, Dh)
            kh = qkv[r0:r0 + S, N + lo:N + hi].astype(compute_dtype)    # (S, Dh)
            vh = qkv[r0:r0 + S, 2 * N + lo:2 * N + hi].astype(compute_dtype)

            # scores = (q*scale) . k^T   (scale already folded into Wq/bq)
            s = lax.dot_general(
                qh, kh,
                dimension_numbers=(((1,), (1,)), ((), ())),
                preferred_element_type=jnp.float32,
            )                                                           # (S, S)

            # numerically stable softmax in f32; reciprocal on the EUP slot
            m = jnp.max(s, axis=-1, keepdims=True)
            e = jnp.exp(s - m)
            denom = jnp.sum(e, axis=-1, keepdims=True)
            p = e * pl.reciprocal(denom, approx=True)

            # TODO(synk): attention-probs dropout omitted (eval-mode identity);
            # head_mask=None, output_attentions=False, a_qdq hooks are calib no-ops.

            ctx = jnp.dot(p.astype(compute_dtype), vh,
                          preferred_element_type=jnp.float32)           # (S, Dh)

            # Direct lane-slice store == permute(0,2,1,3)+view of the reference.
            o_ref[b, :, lo:hi] = ctx.astype(o_ref.dtype)


# ----------------------------- Module wrapper -----------------------------

def llmc_vit_self_attention(hidden_states, params, num_heads, head_size,
                            *, batch_block=None, compute_dtype=jnp.bfloat16):
    """Forward pass matching LlmcViTSelfAttention.forward with head_mask=None,
    output_attentions=False, dropout in eval mode."""
    B, S, D = hidden_states.shape
    N = num_heads * head_size

    if batch_block is None:
        batch_block = 1
        for cand in range(min(B, 8), 0, -1):
            if B % cand == 0:
                batch_block = cand
                break
    assert B % batch_block == 0, "batch_block must divide the batch size"

    # Load-time constant folding (would be done once at model load in practice):
    #   * fuse Q/K/V weights, fold 1/sqrt(Dh) into the Q weight/bias,
    #   * pre-transpose to (D, 3N) so the kernel matmul is canonical,
    #   * cast MXU operands to bf16 (f32 accumulation inside the kernel).
    scale = 1.0 / math.sqrt(head_size)
    wqkv = jnp.concatenate(
        [params["wq"] * scale, params["wk"], params["wv"]], axis=0)      # (3N, D)
    wqkv = wqkv.T.astype(compute_dtype)                                  # (D, 3N)
    bqkv = jnp.concatenate(
        [params["bq"] * scale, params["bk"], params["bv"]]
    ).reshape(1, 3 * N).astype(jnp.float32)
    x = hidden_states.astype(compute_dtype)

    kernel = partial(_fused_vit_attn_kernel,
                     batch_block=batch_block, num_heads=num_heads,
                     head_size=head_size, compute_dtype=compute_dtype)

    out = pl.pallas_call(
        kernel,
        out_shape=jax.ShapeDtypeStruct((B, S, N), jnp.float32),
        grid=(B // batch_block,),
        in_specs=[
            # batch-blocked activation tile (pipelined over the batch axis)
            pl.BlockSpec((batch_block, S, D), lambda i: (i, 0, 0)),
            # fused weight / bias: constant block index -> resident in VMEM
            pl.BlockSpec((D, 3 * N), lambda i: (0, 0)),
            pl.BlockSpec((1, 3 * N), lambda i: (0, 0)),
        ],
        out_specs=pl.BlockSpec((batch_block, S, N), lambda i: (i, 0, 0)),
        compiler_params=pltpu.CompilerParams(
            # batch axis is independent -> shards across v7x's 2 TensorCores
            dimension_semantics=("parallel",),
            # explicit budget with headroom for v7x's 64 MiB physical VMEM
            vmem_limit_bytes=48 * 1024 * 1024,
        ),
    )(x, wqkv, bqkv)

    return (out,)


# ----------------------------- Reference (plain JAX, f32) -----------------------------

def _reference(hidden_states, params, num_heads, head_size):
    B, S, D = hidden_states.shape
    q = hidden_states @ params["wq"].T + params["bq"]
    k = hidden_states @ params["wk"].T + params["bk"]
    v = hidden_states @ params["wv"].T + params["bv"]

    def split_heads(t):
        return t.reshape(B, S, num_heads, head_size).transpose(0, 2, 1, 3)

    qh, kh, vh = split_heads(q), split_heads(k), split_heads(v)
    s = jnp.einsum("bhqd,bhkd->bhqk", qh, kh) / math.sqrt(head_size)
    p = jax.nn.softmax(s, axis=-1)
    ctx = jnp.einsum("bhqk,bhkd->bhqd", p, vh)
    return ctx.transpose(0, 2, 1, 3).reshape(B, S, num_heads * head_size)


# ----------------------------- Main -----------------------------

if __name__ == "__main__":
    B, S, D = 2, 8, 32
    num_heads, head_size = 4, 8
    all_head_size = num_heads * head_size  # 32

    key = jax.random.PRNGKey(0)
    keys = jax.random.split(key, 7)
    params = {
        "wq": 0.02 * jax.random.normal(keys[0], (all_head_size, D), jnp.float32),
        "bq": 0.02 * jax.random.normal(keys[1], (all_head_size,), jnp.float32),
        "wk": 0.02 * jax.random.normal(keys[2], (all_head_size, D), jnp.float32),
        "bk": 0.02 * jax.random.normal(keys[3], (all_head_size,), jnp.float32),
        "wv": 0.02 * jax.random.normal(keys[4], (all_head_size, D), jnp.float32),
        "bv": 0.02 * jax.random.normal(keys[5], (all_head_size,), jnp.float32),
    }
    hidden_states = jax.random.normal(keys[6], (B, S, D), jnp.float32)

    (out,) = llmc_vit_self_attention(hidden_states, params, num_heads, head_size)
    out = jax.block_until_ready(out)

    ref = _reference(hidden_states, params, num_heads, head_size)
    assert out.shape == (B, S, all_head_size)
    # Tolerance covers bf16 MXU inputs (f32 accumulation) + the EUP approximate
    # reciprocal in the softmax denominator; measured error here is << 1e-2.
    assert jnp.allclose(out, ref, atol=2e-2, rtol=2e-2), "mismatch vs reference"

    print("KERNEL_OK")
</pallas_src>

<mosaic_0001>
module attributes {stable_mosaic.version = 11 : i64} {
  func.func @_fused_vit_attn_kernel(%arg0: i32, %arg1: memref<2x8x32xbf16, #tpu.memory_space<vmem>>, %arg2: memref<32x96xbf16, #tpu.memory_space<vmem>>, %arg3: memref<1x96xf32, #tpu.memory_space<vmem>>, %arg4: memref<2x8x32xf32, #tpu.memory_space<vmem>>) attributes {dimension_semantics = [#tpu.dimension_semantics<parallel>], iteration_bounds = array<i64: 1>, scalar_prefetch = 0 : i64, scratch_operands = 0 : i64, tpu.core_type = #tpu.core_type<tc>, window_params = [{transform_indices = @transform_0, window_bounds = array<i64: 2, 8, 32>}, {pipeline_mode = #tpu.pipeline_mode<synchronous>, transform_indices = @transform_1, window_bounds = array<i64: 32, 96>}, {pipeline_mode = #tpu.pipeline_mode<synchronous>, transform_indices = @transform_2, window_bounds = array<i64: 1, 96>}, {transform_indices = @transform_3, window_bounds = array<i64: 2, 8, 32>}]} {
    %c0 = arith.constant 0 : index
    %c0_0 = arith.constant 0 : index
    %c0_1 = arith.constant 0 : index
    %0 = vector.load %arg1[%c0, %c0_0, %c0_1] : memref<2x8x32xbf16, #tpu.memory_space<vmem>>, vector<2x8x32xbf16>
    %1 = vector.shape_cast %0 : vector<2x8x32xbf16> to vector<16x32xbf16>
    %c0_2 = arith.constant 0 : index
    %c0_3 = arith.constant 0 : index
    %2 = vector.load %arg2[%c0_2, %c0_3] : memref<32x96xbf16, #tpu.memory_space<vmem>>, vector<32x96xbf16>
    %cst = arith.constant dense<0.000000e+00> : vector<16x96xf32>
    %3 = tpu.matmul %1, %2, %cst {dimension_numbers = #tpu.dot_dimension_numbers<[1], [0], [0], [1], [0, 0, 1, 1], [], []>} : vector<16x32xbf16>, vector<32x96xbf16>, vector<16x96xf32> -> vector<16x96xf32>
    %c0_4 = arith.constant 0 : index
    %c0_5 = arith.constant 0 : index
    %4 = vector.load %arg3[%c0_4, %c0_5] : memref<1x96xf32, #tpu.memory_space<vmem>>, vector<1x96xf32>
    %5 = vector.broadcast %4 : vector<1x96xf32> to vector<16x96xf32>
    %6 = arith.addf %3, %5 : vector<16x96xf32>
    %7 = vector.extract_strided_slice %6 {offsets = [0, 0], sizes = [8, 8], strides = [1, 1]} : vector<16x96xf32> to vector<8x8xf32>
    %8 = arith.truncf %7 : vector<8x8xf32> to vector<8x8xbf16>
    %9 = vector.extract_strided_slice %6 {offsets = [0, 32], sizes = [8, 8], strides = [1, 1]} : vector<16x96xf32> to vector<8x8xf32>
    %10 = arith.truncf %9 : vector<8x8xf32> to vector<8x8xbf16>
    %11 = vector.extract_strided_slice %6 {offsets = [0, 64], sizes = [8, 8], strides = [1, 1]} : vector<16x96xf32> to vector<8x8xf32>
    %12 = arith.truncf %11 : vector<8x8xf32> to vector<8x8xbf16>
    %cst_6 = arith.constant dense<0.000000e+00> : vector<8x8xf32>
    %13 = tpu.matmul %8, %10, %cst_6 {dimension_numbers = #tpu.dot_dimension_numbers<[1], [1], [0], [0], [0, 0, 1, 0], [], []>} : vector<8x8xbf16>, vector<8x8xbf16>, vector<8x8xf32> -> vector<8x8xf32>
    %cst_7 = arith.constant dense<0xFF800000> : vector<8xf32>
    %14 = vector.multi_reduction <maximumf>, %13, %cst_7 [1] : vector<8x8xf32> to vector<8xf32>
    %15 = vector.shape_cast %14 : vector<8xf32> to vector<8x1xf32>
    %16 = vector.broadcast %15 : vector<8x1xf32> to vector<8x8xf32>
    %17 = arith.subf %13, %16 : vector<8x8xf32>
    %18 = math.exp %17 : vector<8x8xf32>
    %cst_8 = arith.constant dense<0.000000e+00> : vector<8xf32>
    %19 = vector.multi_reduction <add>, %18, %cst_8 [1] : vector<8x8xf32> to vector<8xf32>
    %20 = vector.shape_cast %19 : vector<8xf32> to vector<8x1xf32>
    %21 = tpu.reciprocal %20 {approx = true} : vector<8x1xf32> -> vector<8x1xf32>
    %22 = vector.broadcast %21 : vector<8x1xf32> to vector<8x8xf32>
    %23 = arith.mulf %18, %22 : vector<8x8xf32>
    %24 = arith.truncf %23 : vector<8x8xf32> to vector<8x8xbf16>
    %cst_9 = arith.constant dense<0.000000e+00> : vector<8x8xf32>
    %25 = tpu.matmul %24, %12, %cst_9 {dimension_numbers = #tpu.dot_dimension_numbers<[1], [0], [0], [1], [0, 0, 1, 1], [], []>} : vector<8x8xbf16>, vector<8x8xbf16>, vector<8x8xf32> -> vector<8x8xf32>
    %c0_10 = arith.constant 0 : index
    %c0_11 = arith.constant 0 : index
    %c0_12 = arith.constant 0 : index
    %26 = vector.load %arg4[%c0_10, %c0_11, %c0_12] : memref<2x8x32xf32, #tpu.memory_space<vmem>>, vector<1x8x8xf32>
    %27 = vector.shape_cast %26 : vector<1x8x8xf32> to vector<8x8xf32>
    %28 = vector.shape_cast %25 : vector<8x8xf32> to vector<1x8x8xf32>
    tpu.vector_store %arg4[%c0_10, %c0_11, %c0_12], %28 {strides = array<i32>} : memref<2x8x32xf32, #tpu.memory_space<vmem>>, vector<1x8x8xf32>,
    %29 = vector.extract_strided_slice %6 {offsets = [0, 8], sizes = [8, 8], strides = [1, 1]} : vector<16x96xf32> to vector<8x8xf32>
    %30 = arith.truncf %29 : vector<8x8xf32> to vector<8x8xbf16>
    %31 = vector.extract_strided_slice %6 {offsets = [0, 40], sizes = [8, 8], strides = [1, 1]} : vector<16x96xf32> to vector<8x8xf32>
    %32 = arith.truncf %31 : vector<8x8xf32> to vector<8x8xbf16>
    %33 = vector.extract_strided_slice %6 {offsets = [0, 72], sizes = [8, 8], strides = [1, 1]} : vector<16x96xf32> to vector<8x8xf32>
    %34 = arith.truncf %33 : vector<8x8xf32> to vector<8x8xbf16>
    %cst_13 = arith.constant dense<0.000000e+00> : vector<8x8xf32>
    %35 = tpu.matmul %30, %32, %cst_13 {dimension_numbers = #tpu.dot_dimension_numbers<[1], [1], [0], [0], [0, 0, 1, 0], [], []>} : vector<8x8xbf16>, vector<8x8xbf16>, vector<8x8xf32> -> vector<8x8xf32>
    %cst_14 = arith.constant dense<0xFF800000> : vector<8xf32>
    %36 = vector.multi_reduction <maximumf>, %35, %cst_14 [1] : vector<8x8xf32> to vector<8xf32>
    %37 = vector.shape_cast %36 : vector<8xf32> to vector<8x1xf32>
    %38 = vector.broadcast %37 : vector<8x1xf32> to vector<8x8xf32>
    %39 = arith.subf %35, %38 : vector<8x8xf32>
    %40 = math.exp %39 : vector<8x8xf32>
    %cst_15 = arith.constant dense<0.000000e+00> : vector<8xf32>
    %41 = vector.multi_reduction <add>, %40, %cst_15 [1] : vector<8x8xf32> to vector<8xf32>
    %42 = vector.shape_cast %41 : vector<8xf32> to vector<8x1xf32>
    %43 = tpu.reciprocal %42 {approx = true} : vector<8x1xf32> -> vector<8x1xf32>
    %44 = vector.broadcast %43 : vector<8x1xf32> to vector<8x8xf32>
    %45 = arith.mulf %40, %44 : vector<8x8xf32>
    %46 = arith.truncf %45 : vector<8x8xf32> to vector<8x8xbf16>
    %cst_16 = arith.constant dense<0.000000e+00> : vector<8x8xf32>
    %47 = tpu.matmul %46, %34, %cst_16 {dimension_numbers = #tpu.dot_dimension_numbers<[1], [0], [0], [1], [0, 0, 1, 1], [], []>} : vector<8x8xbf16>, vector<8x8xbf16>, vector<8x8xf32> -> vector<8x8xf32>
    %c0_17 = arith.constant 0 : index
    %c0_18 = arith.constant 0 : index
    %c8 = arith.constant 8 : index
    %48 = vector.load %arg4[%c0_17, %c0_18, %c8] : memref<2x8x32xf32, #tpu.memory_space<vmem>>, vector<1x8x8xf32>
    %49 = vector.shape_cast %48 : vector<1x8x8xf32> to vector<8x8xf32>
    %50 = vector.shape_cast %47 : vector<8x8xf32> to vector<1x8x8xf32>
    tpu.vector_store %arg4[%c0_17, %c0_18, %c8], %50 {strides = array<i32>} : memref<2x8x32xf32, #tpu.memory_space<vmem>>, vector<1x8x8xf32>,
    %51 = vector.extract_strided_slice %6 {offsets = [0, 16], sizes = [8, 8], strides = [1, 1]} : vector<16x96xf32> to vector<8x8xf32>
    %52 = arith.truncf %51 : vector<8x8xf32> to vector<8x8xbf16>
    %53 = vector.extract_strided_slice %6 {offsets = [0, 48], sizes = [8, 8], strides = [1, 1]} : vector<16x96xf32> to vector<8x8xf32>
    %54 = arith.truncf %53 : vector<8x8xf32> to vector<8x8xbf16>
    %55 = vector.extract_strided_slice %6 {offsets = [0, 80], sizes = [8, 8], strides = [1, 1]} : vector<16x96xf32> to vector<8x8xf32>
    %56 = arith.truncf %55 : vector<8x8xf32> to vector<8x8xbf16>
    %cst_19 = arith.constant dense<0.000000e+00> : vector<8x8xf32>
    %57 = tpu.matmul %52, %54, %cst_19 {dimension_numbers = #tpu.dot_dimension_numbers<[1], [1], [0], [0], [0, 0, 1, 0], [], []>} : vector<8x8xbf16>, vector<8x8xbf16>, vector<8x8xf32> -> vector<8x8xf32>
    %cst_20 = arith.constant dense<0xFF800000> : vector<8xf32>
    %58 = vector.multi_reduction <maximumf>, %57, %cst_20 [1] : vector<8x8xf32> to vector<8xf32>
    %59 = vector.shape_cast %58 : vector<8xf32> to vector<8x1xf32>
    %60 = vector.broadcast %59 : vector<8x1xf32> to vector<8x8xf32>
    %61 = arith.subf %57, %60 : vector<8x8xf32>
    %62 = math.exp %61 : vector<8x8xf32>
    %cst_21 = arith.constant dense<0.000000e+00> : vector<8xf32>
    %63 = vector.multi_reduction <add>, %62, %cst_21 [1] : vector<8x8xf32> to vector<8xf32>
    %64 = vector.shape_cast %63 : vector<8xf32> to vector<8x1xf32>
    %65 = tpu.reciprocal %64 {approx = true} : vector<8x1xf32> -> vector<8x1xf32>
    %66 = vector.broadcast %65 : vector<8x1xf32> to vector<8x8xf32>
    %67 = arith.mulf %62, %66 : vector<8x8xf32>
    %68 = arith.truncf %67 : vector<8x8xf32> to vector<8x8xbf16>
    %cst_22 = arith.constant dense<0.000000e+00> : vector<8x8xf32>
    %69 = tpu.matmul %68, %56, %cst_22 {dimension_numbers = #tpu.dot_dimension_numbers<[1], [0], [0], [1], [0, 0, 1, 1], [], []>} : vector<8x8xbf16>, vector<8x8xbf16>, vector<8x8xf32> -> vector<8x8xf32>
    %c0_23 = arith.constant 0 : index
    %c0_24 = arith.constant 0 : index
    %c16 = arith.constant 16 : index
    %70 = vector.load %arg4[%c0_23, %c0_24, %c16] : memref<2x8x32xf32, #tpu.memory_space<vmem>>, vector<1x8x8xf32>
    %71 = vector.shape_cast %70 : vector<1x8x8xf32> to vector<8x8xf32>
    %72 = vector.shape_cast %69 : vector<8x8xf32> to vector<1x8x8xf32>
    tpu.vector_store %arg4[%c0_23, %c0_24, %c16], %72 {strides = array<i32>} : memref<2x8x32xf32, #tpu.memory_space<vmem>>, vector<1x8x8xf32>,
    %73 = vector.extract_strided_slice %6 {offsets = [0, 24], sizes = [8, 8], strides = [1, 1]} : vector<16x96xf32> to vector<8x8xf32>
    %74 = arith.truncf %73 : vector<8x8xf32> to vector<8x8xbf16>
    %75 = vector.extract_strided_slice %6 {offsets = [0, 56], sizes = [8, 8], strides = [1, 1]} : vector<16x96xf32> to vector<8x8xf32>
    %76 = arith.truncf %75 : vector<8x8xf32> to vector<8x8xbf16>
    %77 = vector.extract_strided_slice %6 {offsets = [0, 88], sizes = [8, 8], strides = [1, 1]} : vector<16x96xf32> to vector<8x8xf32>
    %78 = arith.truncf %77 : vector<8x8xf32> to vector<8x8xbf16>
    %cst_25 = arith.constant dense<0.000000e+00> : vector<8x8xf32>
    %79 = tpu.matmul %74, %76, %cst_25 {dimension_numbers = #tpu.dot_dimension_numbers<[1], [1], [0], [0], [0, 0, 1, 0], [], []>} : vector<8x8xbf16>, vector<8x8xbf16>, vector<8x8xf32> -> vector<8x8xf32>
    %cst_26 = arith.constant dense<0xFF800000> : vector<8xf32>
    %80 = vector.multi_reduction <maximumf>, %79, %cst_26 [1] : vector<8x8xf32> to vector<8xf32>
    %81 = vector.shape_cast %80 : vector<8xf32> to vector<8x1xf32>
    %82 = vector.broadcast %81 : vector<8x1xf32> to vector<8x8xf32>
    %83 = arith.subf %79, %82 : vector<8x8xf32>
    %84 = math.exp %83 : vector<8x8xf32>
    %cst_27 = arith.constant dense<0.000000e+00> : vector<8xf32>
    %85 = vector.multi_reduction <add>, %84, %cst_27 [1] : vector<8x8xf32> to vector<8xf32>
    %86 = vector.shape_cast %85 : vector<8xf32> to vector<8x1xf32>
    %87 = tpu.reciprocal %86 {approx = true} : vector<8x1xf32> -> vector<8x1xf32>
    %88 = vector.broadcast %87 : vector<8x1xf32> to vector<8x8xf32>
    %89 = arith.mulf %84, %88 : vector<8x8xf32>
    %90 = arith.truncf %89 : vector<8x8xf32> to vector<8x8xbf16>
    %cst_28 = arith.constant dense<0.000000e+00> : vector<8x8xf32>
    %91 = tpu.matmul %90, %78, %cst_28 {dimension_numbers = #tpu.dot_dimension_numbers<[1], [0], [0], [1], [0, 0, 1, 1], [], []>} : vector<8x8xbf16>, vector<8x8xbf16>, vector<8x8xf32> -> vector<8x8xf32>
    %c0_29 = arith.constant 0 : index
    %c0_30 = arith.constant 0 : index
    %c24 = arith.constant 24 : index
    %92 = vector.load %arg4[%c0_29, %c0_30, %c24] : memref<2x8x32xf32, #tpu.memory_space<vmem>>, vector<1x8x8xf32>
    %93 = vector.shape_cast %92 : vector<1x8x8xf32> to vector<8x8xf32>
    %94 = vector.shape_cast %91 : vector<8x8xf32> to vector<1x8x8xf32>
    tpu.vector_store %arg4[%c0_29, %c0_30, %c24], %94 {strides = array<i32>} : memref<2x8x32xf32, #tpu.memory_space<vmem>>, vector<1x8x8xf32>,
    %95 = vector.extract_strided_slice %6 {offsets = [8, 0], sizes = [8, 8], strides = [1, 1]} : vector<16x96xf32> to vector<8x8xf32>
    %96 = arith.truncf %95 : vector<8x8xf32> to vector<8x8xbf16>
    %97 = vector.extract_strided_slice %6 {offsets = [8, 32], sizes = [8, 8], strides = [1, 1]} : vector<16x96xf32> to vector<8x8xf32>
    %98 = arith.truncf %97 : vector<8x8xf32> to vector<8x8xbf16>
    %99 = vector.extract_strided_slice %6 {offsets = [8, 64], sizes = [8, 8], strides = [1, 1]} : vector<16x96xf32> to vector<8x8xf32>
    %100 = arith.truncf %99 : vector<8x8xf32> to vector<8x8xbf16>
    %cst_31 = arith.constant dense<0.000000e+00> : vector<8x8xf32>
    %101 = tpu.matmul %96, %98, %cst_31 {dimension_numbers = #tpu.dot_dimension_numbers<[1], [1], [0], [0], [0, 0, 1, 0], [], []>} : vector<8x8xbf16>, vector<8x8xbf16>, vector<8x8xf32> -> vector<8x8xf32>
    %cst_32 = arith.constant dense<0xFF800000> : vector<8xf32>
    %102 = vector.multi_reduction <maximumf>, %101, %cst_32 [1] : vector<8x8xf32> to vector<8xf32>
    %103 = vector.shape_cast %102 : vector<8xf32> to vector<8x1xf32>
    %104 = vector.broadcast %103 : vector<8x1xf32> to vector<8x8xf32>
    %105 = arith.subf %101, %104 : vector<8x8xf32>
    %106 = math.exp %105 : vector<8x8xf32>
    %cst_33 = arith.constant dense<0.000000e+00> : vector<8xf32>
    %107 = vector.multi_reduction <add>, %106, %cst_33 [1] : vector<8x8xf32> to vector<8xf32>
    %108 = vector.shape_cast %107 : vector<8xf32> to vector<8x1xf32>
    %109 = tpu.reciprocal %108 {approx = true} : vector<8x1xf32> -> vector<8x1xf32>
    %110 = vector.broadcast %109 : vector<8x1xf32> to vector<8x8xf32>
    %111 = arith.mulf %106, %110 : vector<8x8xf32>
    %112 = arith.truncf %111 : vector<8x8xf32> to vector<8x8xbf16>
    %cst_34 = arith.constant dense<0.000000e+00> : vector<8x8xf32>
    %113 = tpu.matmul %112, %100, %cst_34 {dimension_numbers = #tpu.dot_dimension_numbers<[1], [0], [0], [1], [0, 0, 1, 1], [], []>} : vector<8x8xbf16>, vector<8x8xbf16>, vector<8x8xf32> -> vector<8x8xf32>
    %c1 = arith.constant 1 : index
    %c0_35 = arith.constant 0 : index
    %c0_36 = arith.constant 0 : index
    %114 = vector.load %arg4[%c1, %c0_35, %c0_36] : memref<2x8x32xf32, #tpu.memory_space<vmem>>, vector<1x8x8xf32>
    %115 = vector.shape_cast %114 : vector<1x8x8xf32> to vector<8x8xf32>
    %116 = vector.shape_cast %113 : vector<8x8xf32> to vector<1x8x8xf32>
    tpu.vector_store %arg4[%c1, %c0_35, %c0_36], %116 {strides = array<i32>} : memref<2x8x32xf32, #tpu.memory_space<vmem>>, vector<1x8x8xf32>,
    %117 = vector.extract_strided_slice %6 {offsets = [8, 8], sizes = [8, 8], strides = [1, 1]} : vector<16x96xf32> to vector<8x8xf32>
    %118 = arith.truncf %117 : vector<8x8xf32> to vector<8x8xbf16>
    %119 = vector.extract_strided_slice %6 {offsets = [8, 40], sizes = [8, 8], strides = [1, 1]} : vector<16x96xf32> to vector<8x8xf32>
    %120 = arith.truncf %119 : vector<8x8xf32> to vector<8x8xbf16>
    %121 = vector.extract_strided_slice %6 {offsets = [8, 72], sizes = [8, 8], strides = [1, 1]} : vector<16x96xf32> to vector<8x8xf32>
    %122 = arith.truncf %121 : vector<8x8xf32> to vector<8x8xbf16>
    %cst_37 = arith.constant dense<0.000000e+00> : vector<8x8xf32>
    %123 = tpu.matmul %118, %120, %cst_37 {dimension_numbers = #tpu.dot_dimension_numbers<[1], [1], [0], [0], [0, 0, 1, 0], [], []>} : vector<8x8xbf16>, vector<8x8xbf16>, vector<8x8xf32> -> vector<8x8xf32>
    %cst_38 = arith.constant dense<0xFF800000> : vector<8xf32>
    %124 = vector.multi_reduction <maximumf>, %123, %cst_38 [1] : vector<8x8xf32> to vector<8xf32>
    %125 = vector.shape_cast %124 : vector<8xf32> to vector<8x1xf32>
    %126 = vector.broadcast %125 : vector<8x1xf32> to vector<8x8xf32>
    %127 = arith.subf %123, %126 : vector<8x8xf32>
    %128 = math.exp %127 : vector<8x8xf32>
    %cst_39 = arith.constant dense<0.000000e+00> : vector<8xf32>
    %129 = vector.multi_reduction <add>, %128, %cst_39 [1] : vector<8x8xf32> to vector<8xf32>
    %130 = vector.shape_cast %129 : vector<8xf32> to vector<8x1xf32>
    %131 = tpu.reciprocal %130 {approx = true} : vector<8x1xf32> -> vector<8x1xf32>
    %132 = vector.broadcast %131 : vector<8x1xf32> to vector<8x8xf32>
    %133 = arith.mulf %128, %132 : vector<8x8xf32>
    %134 = arith.truncf %133 : vector<8x8xf32> to vector<8x8xbf16>
    %cst_40 = arith.constant dense<0.000000e+00> : vector<8x8xf32>
    %135 = tpu.matmul %134, %122, %cst_40 {dimension_numbers = #tpu.dot_dimension_numbers<[1], [0], [0], [1], [0, 0, 1, 1], [], []>} : vector<8x8xbf16>, vector<8x8xbf16>, vector<8x8xf32> -> vector<8x8xf32>
    %c1_41 = arith.constant 1 : index
    %c0_42 = arith.constant 0 : index
    %c8_43 = arith.constant 8 : index
    %136 = vector.load %arg4[%c1_41, %c0_42, %c8_43] : memref<2x8x32xf32, #tpu.memory_space<vmem>>, vector<1x8x8xf32>
    %137 = vector.shape_cast %136 : vector<1x8x8xf32> to vector<8x8xf32>
    %138 = vector.shape_cast %135 : vector<8x8xf32> to vector<1x8x8xf32>
    tpu.vector_store %arg4[%c1_41, %c0_42, %c8_43], %138 {strides = array<i32>} : memref<2x8x32xf32, #tpu.memory_space<vmem>>, vector<1x8x8xf32>,
    %139 = vector.extract_strided_slice %6 {offsets = [8, 16], sizes = [8, 8], strides = [1, 1]} : vector<16x96xf32> to vector<8x8xf32>
    %140 = arith.truncf %139 : vector<8x8xf32> to vector<8x8xbf16>
    %141 = vector.extract_strided_slice %6 {offsets = [8, 48], sizes = [8, 8], strides = [1, 1]} : vector<16x96xf32> to vector<8x8xf32>
    %142 = arith.truncf %141 : vector<8x8xf32> to vector<8x8xbf16>
    %143 = vector.extract_strided_slice %6 {offsets = [8, 80], sizes = [8, 8], strides = [1, 1]} : vector<16x96xf32> to vector<8x8xf32>
    %144 = arith.truncf %143 : vector<8x8xf32> to vector<8x8xbf16>
    %cst_44 = arith.constant dense<0.000000e+00> : vector<8x8xf32>
    %145 = tpu.matmul %140, %142, %cst_44 {dimension_numbers = #tpu.dot_dimension_numbers<[1], [1], [0], [0], [0, 0, 1, 0], [], []>} : vector<8x8xbf16>, vector<8x8xbf16>, vector<8x8xf32> -> vector<8x8xf32>
    %cst_45 = arith.constant dense<0xFF800000> : vector<8xf32>
    %146 = vector.multi_reduction <maximumf>, %145, %cst_45 [1] : vector<8x8xf32> to vector<8xf32>
    %147 = vector.shape_cast %146 : vector<8xf32> to vector<8x1xf32>
    %148 = vector.broadcast %147 : vector<8x1xf32> to vector<8x8xf32>
    %149 = arith.subf %145, %148 : vector<8x8xf32>
    %150 = math.exp %149 : vector<8x8xf32>
    %cst_46 = arith.constant dense<0.000000e+00> : vector<8xf32>
    %151 = vector.multi_reduction <add>, %150, %cst_46 [1] : vector<8x8xf32> to vector<8xf32>
    %152 = vector.shape_cast %151 : vector<8xf32> to vector<8x1xf32>
    %153 = tpu.reciprocal %152 {approx = true} : vector<8x1xf32> -> vector<8x1xf32>
    %154 = vector.broadcast %153 : vector<8x1xf32> to vector<8x8xf32>
    %155 = arith.mulf %150, %154 : vector<8x8xf32>
    %156 = arith.truncf %155 : vector<8x8xf32> to vector<8x8xbf16>
    %cst_47 = arith.constant dense<0.000000e+00> : vector<8x8xf32>
    %157 = tpu.matmul %156, %144, %cst_47 {dimension_numbers = #tpu.dot_dimension_numbers<[1], [0], [0], [1], [0, 0, 1, 1], [], []>} : vector<8x8xbf16>, vector<8x8xbf16>, vector<8x8xf32> -> vector<8x8xf32>
    %c1_48 = arith.constant 1 : index
    %c0_49 = arith.constant 0 : index
    %c16_50 = arith.constant 16 : index
    %158 = vector.load %arg4[%c1_48, %c0_49, %c16_50] : memref<2x8x32xf32, #tpu.memory_space<vmem>>, vector<1x8x8xf32>
    %159 = vector.shape_cast %158 : vector<1x8x8xf32> to vector<8x8xf32>
    %160 = vector.shape_cast %157 : vector<8x8xf32> to vector<1x8x8xf32>
    tpu.vector_store %arg4[%c1_48, %c0_49, %c16_50], %160 {strides = array<i32>} : memref<2x8x32xf32, #tpu.memory_space<vmem>>, vector<1x8x8xf32>,
    %161 = vector.extract_strided_slice %6 {offsets = [8, 24], sizes = [8, 8], strides = [1, 1]} : vector<16x96xf32> to vector<8x8xf32>
    %162 = arith.truncf %161 : vector<8x8xf32> to vector<8x8xbf16>
    %163 = vector.extract_strided_slice %6 {offsets = [8, 56], sizes = [8, 8], strides = [1, 1]} : vector<16x96xf32> to vector<8x8xf32>
    %164 = arith.truncf %163 : vector<8x8xf32> to vector<8x8xbf16>
    %165 = vector.extract_strided_slice %6 {offsets = [8, 88], sizes = [8, 8], strides = [1, 1]} : vector<16x96xf32> to vector<8x8xf32>
    %166 = arith.truncf %165 : vector<8x8xf32> to vector<8x8xbf16>
    %cst_51 = arith.constant dense<0.000000e+00> : vector<8x8xf32>
    %167 = tpu.matmul %162, %164, %cst_51 {dimension_numbers = #tpu.dot_dimension_numbers<[1], [1], [0], [0], [0, 0, 1, 0], [], []>} : vector<8x8xbf16>, vector<8x8xbf16>, vector<8x8xf32> -> vector<8x8xf32>
    %cst_52 = arith.constant dense<0xFF800000> : vector<8xf32>
    %168 = vector.multi_reduction <maximumf>, %167, %cst_52 [1] : vector<8x8xf32> to vector<8xf32>
    %169 = vector.shape_cast %168 : vector<8xf32> to vector<8x1xf32>
    %170 = vector.broadcast %169 : vector<8x1xf32> to vector<8x8xf32>
    %171 = arith.subf %167, %170 : vector<8x8xf32>
    %172 = math.exp %171 : vector<8x8xf32>
    %cst_53 = arith.constant dense<0.000000e+00> : vector<8xf32>
    %173 = vector.multi_reduction <add>, %172, %cst_53 [1] : vector<8x8xf32> to vector<8xf32>
    %174 = vector.shape_cast %173 : vector<8xf32> to vector<8x1xf32>
    %175 = tpu.reciprocal %174 {approx = true} : vector<8x1xf32> -> vector<8x1xf32>
    %176 = vector.broadcast %175 : vector<8x1xf32> to vector<8x8xf32>
    %177 = arith.mulf %172, %176 : vector<8x8xf32>
    %178 = arith.truncf %177 : vector<8x8xf32> to vector<8x8xbf16>
    %cst_54 = arith.constant dense<0.000000e+00> : vector<8x8xf32>
    %179 = tpu.matmul %178, %166, %cst_54 {dimension_numbers = #tpu.dot_dimension_numbers<[1], [0], [0], [1], [0, 0, 1, 1], [], []>} : vector<8x8xbf16>, vector<8x8xbf16>, vector<8x8xf32> -> vector<8x8xf32>
    %c1_55 = arith.constant 1 : index
    %c0_56 = arith.constant 0 : index
    %c24_57 = arith.constant 24 : index
    %180 = vector.load %arg4[%c1_55, %c0_56, %c24_57] : memref<2x8x32xf32, #tpu.memory_space<vmem>>, vector<1x8x8xf32>
    %181 = vector.shape_cast %180 : vector<1x8x8xf32> to vector<8x8xf32>
    %182 = vector.shape_cast %179 : vector<8x8xf32> to vector<1x8x8xf32>
    tpu.vector_store %arg4[%c1_55, %c0_56, %c24_57], %182 {strides = array<i32>} : memref<2x8x32xf32, #tpu.memory_space<vmem>>, vector<1x8x8xf32>,
    return
  }
  func.func @transform_0(%arg0: i32) -> (i32, i32, i32) {
    %c0_i32 = arith.constant 0 : i32
    %c0_i32_0 = arith.constant 0 : i32
    %c0_i32_1 = arith.constant 0 : i32
    return %arg0, %c0_i32, %c0_i32_0 : i32, i32, i32
  }
  func.func @transform_1(%arg0: i32) -> (i32, i32) {
    %c0_i32 = arith.constant 0 : i32
    %c0_i32_0 = arith.constant 0 : i32
    %c0_i32_1 = arith.constant 0 : i32
    return %c0_i32, %c0_i32_0 : i32, i32
  }
  func.func @transform_2(%arg0: i32) -> (i32, i32) {
    %c0_i32 = arith.constant 0 : i32
    %c0_i32_0 = arith.constant 0 : i32
    %c0_i32_1 = arith.constant 0 : i32
    return %c0_i32, %c0_i32_0 : i32, i32
  }
  func.func @transform_3(%arg0: i32) -> (i32, i32, i32) {
    %c0_i32 = arith.constant 0 : i32
    %c0_i32_0 = arith.constant 0 : i32
    %c0_i32_1 = arith.constant 0 : i32
    return %arg0, %c0_i32, %c0_i32_0 : i32, i32, i32
  }
}

</mosaic_0001>

<llo_original>
// kernel: tpu_custom_call.1
$region0: #{tpu_custom_call.1}
  #allocation0 [shape = 'u32[]', space=smem, size = 0x4, offset = 0x4, fixed_abs, tag = 'smem constant byte address 0x4 - core index']
  #allocation1 [shape = 'u32[144,128]{1,0:T(1,128)}', space=vmem, size = 0x12000, scoped, tag = 'internal scratch']
  %s0 = inlined_call_operand.hbm [shape: bf16[2,8,32], index: 0, kind: input, shape index: {}]
  %s1 = inlined_call_operand.hbm [shape: bf16[32,96], index: 1, kind: input, shape index: {}]
  %s2 = inlined_call_operand.vmem [shape: f32[1,96], index: 2, kind: input, shape index: {}]
  %s3 = inlined_call_operand.hbm [shape: f32[2,8,32], index: 3, kind: output, shape index: {}]
  %s4 = sld [smem:[#allocation0]]
  $region30: #{tpu_custom_call.1} parent=0
    _
  %s6 = ssub.s32 1, %s4
  %s7 = scalar_select 0, %s6, %s4
  $region1: #{tpu_custom_call.1} parent=0
    #allocation2 [shape = 'u8[4096]{0}', space=vmem, size = 0x1000, scoped, tag = 'input window, operand 0, single buffered']
    #allocation3 [shape = 's32[1]{0}', space=sflag, size = 0x4, scoped, tag = 'scoped memory for tpu_custom_call.1']
    #allocation4 [shape = 's32[1]{0}', space=sflag, size = 0x4, scoped, tag = 'scoped memory for tpu_custom_call.1']
    #allocation5 [shape = 'u8[8192]{0}', space=vmem, size = 0x2000, scoped, tag = 'input window, operand 1, single buffered']
    #allocation6 [shape = 's32[1]{0}', space=sflag, size = 0x4, scoped, tag = 'scoped memory for tpu_custom_call.1']
    #allocation7 [shape = 'u8[8192]{0}', space=vmem, size = 0x2000, scoped, tag = 'output window, operand 0, single buffered']
    %8 = vsyncpa [#allocation3], 0
    %9 = vsyncpa [#allocation6], 0
    %10 = vsyncpa [#allocation4], 0
    // Predicated region
    $region2: #{tpu_custom_call.1} parent=1 // pred_check
      _
    $region3: #{tpu_custom_call.1} parent=1 // pred_check_branch
      %12 = sbr.rel (0) target = $region5
    $region4: #{tpu_custom_call.1} parent=1 // pred_region
      %s14 = ssub.s32 128, 128
      %15 = vsyncadd [#allocation3], %s14
      %s16 = sshll.u32 [#allocation2], 4
      %s17 = int_to_ptr.vmem [resolvable:$true] %s16
      %22 = dma.hbm_to_vmem [thread:$0]  %s0, 128, %s17, [#allocation3], 64, 64, 4
    $region5: #{tpu_custom_call.1} parent=1 // pred_fallthru
      _
    // Predicated region
    $region6: #{tpu_custom_call.1} parent=1 // pred_check
      _
    $region7: #{tpu_custom_call.1} parent=1 // pred_check_branch
      %24 = sbr.rel (0) target = $region9
    $region8: #{tpu_custom_call.1} parent=1 // pred_region
      %s26 = ssub.s32 256, 256
      %27 = vsyncadd [#allocation6], %s26
      %s28 = sshll.u32 [#allocation5], 4
      %s29 = int_to_ptr.vmem [resolvable:$true] %s28
      %34 = dma.hbm_to_vmem [thread:$0]  %s1, 256, %s29, [#allocation6], 64, 64, 4
    $region9: #{tpu_custom_call.1} parent=1 // pred_fallthru
      _
    // Predicated region
    $region10: #{tpu_custom_call.1} parent=1 // pred_check
      _
    $region11: #{tpu_custom_call.1} parent=1 // pred_check_branch
      %36 = sbr.rel (0) target = $region13
    $region12: #{tpu_custom_call.1} parent=1 // pred_region
      _
    $region13: #{tpu_custom_call.1} parent=1 // pred_fallthru
      _
    // Predicated region
    $region14: #{tpu_custom_call.1} parent=1 // pred_check
      _
    $region15: #{tpu_custom_call.1} parent=1 // pred_check_branch
      %38 = sbr.rel (0) target = $region17
    $region16: #{tpu_custom_call.1} parent=1 // pred_region
      %39 = dma.done [#allocation3], 128
    $region17: #{tpu_custom_call.1} parent=1 // pred_fallthru
      _
    // Predicated region
    $region18: #{tpu_custom_call.1} parent=1 // pred_check
      _
    $region19: #{tpu_custom_call.1} parent=1 // pred_check_branch
      %41 = sbr.rel (0) target = $region21
    $region20: #{tpu_custom_call.1} parent=1 // pred_region
      %42 = dma.done [#allocation6], 256
    $region21: #{tpu_custom_call.1} parent=1 // pred_fallthru
      _
    %v44 = vld [vmem:[#allocation2] sm:$0xf]
    %v45 = vld [vmem:[#allocation2 + $0x4] sm:$0xf]
    %v46 = vld [vmem:[#allocation5] sm:$0xf]
    %v47 = vld [vmem:[#allocation5 + $0x4] sm:$0xf]
    %v48 = vld [vmem:[#allocation5 + $0x8] sm:$0xf]
    %v49 = vld [vmem:[#allocation5 + $0xc] sm:$0xf]
    %v50 = vld [vmem:[%s2] sm:$0x1]
    %v52 = vlaneseq
    %v53 = vshrl.u32 %v52, 7
    %v54 = vsub.s32 0, %v53
    %v55 = vrot.slane %v50, %v54
    %v59 = vunpack.c.l.b16 %v44
    %v60 = vunpack.c.l.b16 %v45
    %v61 = vpack.c.b16 %v60, %v59
    %v66 = vunpack.c.l.b16 %v46
    %v67 = vunpack.c.l.b16 %v47
    %v68 = vunpack.c.l.b16 %v48
    %v69 = vunpack.c.l.b16 %v49
    %v70 = vpack.c.b16 %v67, %v66
    %v71 = vpack.c.b16 %v69, %v68
    %vm74 = vcmask 261120
    %v76 = vsel %vm74, %v61, 0
    %78 = vmatprep.subr.bf16.mxu0 0
    %79 = vmatpush1.bf16.msra.mxu0 %v70
    %80 = vmatprep.subr.bf16.mxu0 0
    %81 = vmatpush1.bf16.msra.mxu0 %v71
    %82 = vmatprep.subr.bf16.mxu0 0
    %83 = vmatpush1.bf16.msra.mxu0 0
    %84 = vmatprep.subr.bf16.mxu0 0
    %85 = vmatpush1.bf16.msra.mxu0 0
    %86 = vmatprep.subr.bf16.mxu0 0
    %87 = vmatpush1.bf16.msra.mxu0 0
    %88 = vmatprep.subr.bf16.mxu0 0
    %89 = vmatpush1.bf16.msra.mxu0 0
    %90 = vmatprep.subr.bf16.mxu0 0
    %91 = vmatpush1.bf16.msra.mxu0 0
    %92 = vmatprep.subr.bf16.mxu0 0
    %93 = vmatpush1.bf16.msra.mxu0 0
    %94 = vmatprep.subr.bf16.mxu0 0
    %95 = vmatpush1.bf16.msra.mxu0 0
    %96 = vmatprep.subr.bf16.mxu0 0
    %97 = vmatpush1.bf16.msra.mxu0 0
    %98 = vmatprep.subr.bf16.mxu0 0
    %99 = vmatpush1.bf16.msra.mxu0 0
    %100 = vmatprep.subr.bf16.mxu0 0
    %101 = vmatpush1.bf16.msra.mxu0 0
    %102 = vmatprep.subr.bf16.mxu0 0
    %103 = vmatpush1.bf16.msra.mxu0 0
    %104 = vmatprep.subr.bf16.mxu0 0
    %105 = vmatpush1.bf16.msra.mxu0 0
    %106 = vmatprep.subr.bf16.mxu0 0
    %107 = vmatpush1.bf16.msra.mxu0 0
    %108 = vmatprep.subr.bf16.mxu0 0
    %109 = vmatpush1.bf16.msra.mxu0 0
    %110 = vmatprep.mubr.bf16.mxu0 0
    %111 = vmatmul.mubr.bf16.gmra.mrb[0].mxu0 %v76
    %v112 = vpop.f32.mrb[0].mxu0
    %v113 = vadd.f32 %v55, %v112
    %v114 = vpop.f32.mrb[0].mxu0
    %v115 = vpop.f32.mrb[0].mxu0
    %v116 = vadd.f32 %v55, %v115
    %v117 = vpop.f32.mrb[0].mxu0
    %118 = vdwg.mxu0
    %v119 = vpack.c.bf16 %v113, %v113
    %121 = vrot.lane.b32.xlu0 %v119, 96
    %v122 = vpop.permute.xlu0 %121
    %vm123 = vcmask 64512
    %v125 = vsel %vm123, %v119, 0
    %v128 = vsel %vm123, %v122, 0
    %130 = vmatprep.subr.bf16.mxu0 0
    %131 = vmatpush1.bf16.xpose.msra.mxu0 %v128
    %132 = vmatprep.subr.bf16.mxu0 0
    %133 = vmatpush1.bf16.xpose.msra.mxu0 0
    %134 = vmatprep.subr.bf16.mxu0 0
    %135 = vmatpush1.bf16.xpose.msra.mxu0 0
    %136 = vmatprep.subr.bf16.mxu0 0
    %137 = vmatpush1.bf16.xpose.msra.mxu0 0
    %138 = vmatprep.subr.bf16.mxu0 0
    %139 = vmatpush1.bf16.xpose.msra.mxu0 0
    %140 = vmatprep.subr.bf16.mxu0 0
    %141 = vmatpush1.bf16.xpose.msra.mxu0 0
    %142 = vmatprep.subr.bf16.mxu0 0
    %143 = vmatpush1.bf16.xpose.msra.mxu0 0
    %144 = vmatprep.subr.bf16.mxu0 0
    %145 = vmatpush1.bf16.xpose.msra.mxu0 0
    %146 = vmatprep.subr.bf16.mxu0 0
    %147 = vmatpush1.bf16.xpose.msra.mxu0 0
    %148 = vmatprep.subr.bf16.mxu0 0
    %149 = vmatpush1.bf16.xpose.msra.mxu0 0
    %150 = vmatprep.subr.bf16.mxu0 0
    %151 = vmatpush1.bf16.xpose.msra.mxu0 0
    %152 = vmatprep.subr.bf16.mxu0 0
    %153 = vmatpush1.bf16.xpose.msra.mxu0 0
    %154 = vmatprep.subr.bf16.mxu0 0
    %155 = vmatpush1.bf16.xpose.msra.mxu0 0
    %156 = vmatprep.subr.bf16.mxu0 0
    %157 = vmatpush1.bf16.xpose.msra.mxu0 0
    %158 = vmatprep.subr.bf16.mxu0 0
    %159 = vmatpush1.bf16.xpose.msra.mxu0 0
    %160 = vmatprep.subr.bf16.mxu0 0
    %161 = vmatpush1.bf16.xpose.msra.mxu0 0
    %162 = vmatprep.mubr.bf16.mxu0 0
    %163 = vmatmul.mubr.bf16.gmra.mrb[0].mxu0 %v125
    %v164 = vpop.f32.mrb[0].mxu0
    %v165 = vadd.f32 0.0, %v164
    %v166 = vpop.f32.mrb[0].mxu0
    %v167 = vpop.f32.mrb[0].mxu0
    %v168 = vpop.f32.mrb[0].mxu0
    %169 = vdwg.mxu0
    %v170 = vsel %vm123, %v165, -inf
    %171 = vmax.xlane.f32.xlu0 %v170
    %v172 = vpop.xlane.xlu0 %171
    %v173 = vsub.f32 %v165, %v172
    %v174 = vmul.f32 %v173, 1.442695
    %v175 = vpow.pop %v174
    %v176 = vsel %vm123, %v175, 0.0
    %177 = vadd.xlane.f32.xlu0 %v176
    %v178 = vpop.xlane.xlu0 %177
    %v179 = vrcp.pop %v178
    %v180 = vmul.f32 %v175, %v179
    %v181 = vpack.c.bf16 %v180, %v180
    %182 = vrot.lane.b32.xlu0 %v119, 64
    %v183 = vpop.permute.xlu0 %182
    %v185 = vsel %vm123, %v181, 0
    %vm187 = vcmask 1043456
    %v189 = vsel %vm187, %v183, 0
    %191 = vmatprep.subr.bf16.mxu0 0
    %192 = vmatpush1.bf16.msra.mxu0 %v189
    %193 = vmatprep.subr.bf16.mxu0 0
    %194 = vmatpush1.bf16.msra.mxu0 0
    %195 = vmatprep.subr.bf16.mxu0 0
    %196 = vmatpush1.bf16.msra.mxu0 0
    %197 = vmatprep.subr.bf16.mxu0 0
    %198 = vmatpush1.bf16.msra.mxu0 0
    %199 = vmatprep.subr.bf16.mxu0 0
    %200 = vmatpush1.bf16.msra.mxu0 0
    %201 = vmatprep.subr.bf16.mxu0 0
    %202 = vmatpush1.bf16.msra.mxu0 0
    %203 = vmatprep.subr.bf16.mxu0 0
    %204 = vmatpush1.bf16.msra.mxu0 0
    %205 = vmatprep.subr.bf16.mxu0 0
    %206 = vmatpush1.bf16.msra.mxu0 0
    %207 = vmatprep.subr.bf16.mxu0 0
    %208 = vmatpush1.bf16.msra.mxu0 0
    %209 = vmatprep.subr.bf16.mxu0 0
    %210 = vmatpush1.bf16.msra.mxu0 0
    %211 = vmatprep.subr.bf16.mxu0 0
    %212 = vmatpush1.bf16.msra.mxu0 0
    %213 = vmatprep.subr.bf16.mxu0 0
    %214 = vmatpush1.bf16.msra.mxu0 0
    %215 = vmatprep.subr.bf16.mxu0 0
    %216 = vmatpush1.bf16.msra.mxu0 0
    %217 = vmatprep.subr.bf16.mxu0 0
    %218 = vmatpush1.bf16.msra.mxu0 0
    %219 = vmatprep.subr.bf16.mxu0 0
    %220 = vmatpush1.bf16.msra.mxu0 0
    %221 = vmatprep.subr.bf16.mxu0 0
    %222 = vmatpush1.bf16.msra.mxu0 0
    %223 = vmatprep.mubr.bf16.mxu0 0
    %224 = vmatmul.mubr.bf16.gmra.mrb[0].mxu0 %v185
    %v225 = vpop.f32.mrb[0].mxu0
    %v226 = vadd.f32 0.0, %v225
    %v227 = vpop.f32.mrb[0].mxu0
    %v228 = vpop.f32.mrb[0].mxu0
    %v229 = vpop.f32.mrb[0].mxu0
    %230 = vdwg.mxu0
    %231 = vst.msk [vmem:[#allocation7] sm:$0xff] %vm123, %v226
    %232 = vrot.lane.b32.xlu0 %v119, 120
    %v233 = vpop.permute.xlu0 %232
    %234 = vrot.lane.b32.xlu0 %v119, 88
    %v235 = vpop.permute.xlu0 %234
    %v237 = vsel %vm123, %v233, 0
    %v240 = vsel %vm123, %v235, 0
    %242 = vmatprep.subr.bf16.mxu0 0
    %243 = vmatpush1.bf16.xpose.msra.mxu0 %v240
    %244 = vmatprep.subr.bf16.mxu0 0
    %245 = vmatpush1.bf16.xpose.msra.mxu0 0
    %246 = vmatprep.subr.bf16.mxu0 0
    %247 = vmatpush1.bf16.xpose.msra.mxu0 0
    %248 = vmatprep.subr.bf16.mxu0 0
    %249 = vmatpush1.bf16.xpose.msra.mxu0 0
    %250 = vmatprep.subr.bf16.mxu0 0
    %251 = vmatpush1.bf16.xpose.msra.mxu0 0
    %252 = vmatprep.subr.bf16.mxu0 0
    %253 = vmatpush1.bf16.xpose.msra.mxu0 0
    %254 = vmatprep.subr.bf16.mxu0 0
    %255 = vmatpush1.bf16.xpose.msra.mxu0 0
    %256 = vmatprep.subr.bf16.mxu0 0
    %257 = vmatpush1.bf16.xpose.msra.mxu0 0
    %258 = vmatprep.subr.bf16.mxu0 0
    %259 = vmatpush1.bf16.xpose.msra.mxu0 0
    %260 = vmatprep.subr.bf16.mxu0 0
    %261 = vmatpush1.bf16.xpose.msra.mxu0 0
    %262 = vmatprep.subr.bf16.mxu0 0
    %263 = vmatpush1.bf16.xpose.msra.mxu0 0
    %264 = vmatprep.subr.bf16.mxu0 0
    %265 = vmatpush1.bf16.xpose.msra.mxu0 0
    %266 = vmatprep.subr.bf16.mxu0 0
    %267 = vmatpush1.bf16.xpose.msra.mxu0 0
    %268 = vmatprep.subr.bf16.mxu0 0
    %269 = vmatpush1.bf16.xpose.msra.mxu0 0
    %270 = vmatprep.subr.bf16.mxu0 0
    %271 = vmatpush1.bf16.xpose.msra.mxu0 0
    %272 = vmatprep.subr.bf16.mxu0 0
    %273 = vmatpush1.bf16.xpose.msra.mxu0 0
    %274 = vmatprep.mubr.bf16.mxu0 0
    %275 = vmatmul.mubr.bf16.gmra.mrb[0].mxu0 %v237
    %v276 = vpop.f32.mrb[0].mxu0
    %v277 = vadd.f32 0.0, %v276
    %v278 = vpop.f32.mrb[0].mxu0
    %v279 = vpop.f32.mrb[0].mxu0
    %v280 = vpop.f32.mrb[0].mxu0
    %281 = vdwg.mxu0
    %v282 = vsel %vm123, %v277, -inf
    %283 = vmax.xlane.f32.xlu0 %v282
    %v284 = vpop.xlane.xlu0 %283
    %v285 = vsub.f32 %v277, %v284
    %v286 = vmul.f32 %v285, 1.442695
    %v287 = vpow.pop %v286
    %v288 = vsel %vm123, %v287, 0.0
    %289 = vadd.xlane.f32.xlu0 %v288
    %v290 = vpop.xlane.xlu0 %289
    %v291 = vrcp.pop %v290
    %v292 = vmul.f32 %v287, %v291
    %v293 = vpack.c.bf16 %v292, %v292
    %294 = vrot.lane.b32.xlu0 %v119, 56
    %v295 = vpop.permute.xlu0 %294
    %v297 = vsel %vm123, %v293, 0
    %v300 = vsel %vm187, %v295, 0
    %302 = vmatprep.subr.bf16.mxu0 0
    %303 = vmatpush1.bf16.msra.mxu0 %v300
    %304 = vmatprep.subr.bf16.mxu0 0
    %305 = vmatpush1.bf16.msra.mxu0 0
    %306 = vmatprep.subr.bf16.mxu0 0
    %307 = vmatpush1.bf16.msra.mxu0 0
    %308 = vmatprep.subr.bf16.mxu0 0
    %309 = vmatpush1.bf16.msra.mxu0 0
    %310 = vmatprep.subr.bf16.mxu0 0
    %311 = vmatpush1.bf16.msra.mxu0 0
    %312 = vmatprep.subr.bf16.mxu0 0
    %313 = vmatpush1.bf16.msra.mxu0 0
    %314 = vmatprep.subr.bf16.mxu0 0
    %315 = vmatpush1.bf16.msra.mxu0 0
    %316 = vmatprep.subr.bf16.mxu0 0
    %317 = vmatpush1.bf16.msra.mxu0 0
    %318 = vmatprep.subr.bf16.mxu0 0
    %319 = vmatpush1.bf16.msra.mxu0 0
    %320 = vmatprep.subr.bf16.mxu0 0
    %321 = vmatpush1.bf16.msra.mxu0 0
    %322 = vmatprep.subr.bf16.mxu0 0
    %323 = vmatpush1.bf16.msra.mxu0 0
    %324 = vmatprep.subr.bf16.mxu0 0
    %325 = vmatpush1.bf16.msra.mxu0 0
    %326 = vmatprep.subr.bf16.mxu0 0
    %327 = vmatpush1.bf16.msra.mxu0 0
    %328 = vmatprep.subr.bf16.mxu0 0
    %329 = vmatpush1.bf16.msra.mxu0 0
    %330 = vmatprep.subr.bf16.mxu0 0
    %331 = vmatpush1.bf16.msra.mxu0 0
    %332 = vmatprep.subr.bf16.mxu0 0
    %333 = vmatpush1.bf16.msra.mxu0 0
    %334 = vmatprep.mubr.bf16.mxu0 0
    %335 = vmatmul.mubr.bf16.gmra.mrb[0].mxu0 %v297
    %v336 = vpop.f32.mrb[0].mxu0
    %v337 = vadd.f32 0.0, %v336
    %v338 = vpop.f32.mrb[0].mxu0
    %v339 = vpop.f32.mrb[0].mxu0
    %v340 = vpop.f32.mrb[0].mxu0
    %341 = vdwg.mxu0
    %343 = vrot.lane.b32.xlu0 %v337, 8
    %v344 = vpop.permute.xlu0 %343
    %vm346 = vcmask 130112
    %347 = vst.msk [vmem:[#allocation7] sm:$0xff] %vm346, %v344
    %348 = vrot.lane.b32.xlu0 %v119, 112
    %v349 = vpop.permute.xlu0 %348
    %350 = vrot.lane.b32.xlu0 %v119, 80
    %v351 = vpop.permute.xlu0 %350
    %v353 = vsel %vm123, %v349, 0
    %v356 = vsel %vm123, %v351, 0
    %358 = vmatprep.subr.bf16.mxu0 0
    %359 = vmatpush1.bf16.xpose.msra.mxu0 %v356
    %360 = vmatprep.subr.bf16.mxu0 0
    %361 = vmatpush1.bf16.xpose.msra.mxu0 0
    %362 = vmatprep.subr.bf16.mxu0 0
    %363 = vmatpush1.bf16.xpose.msra.mxu0 0
    %364 = vmatprep.subr.bf16.mxu0 0
    %365 = vmatpush1.bf16.xpose.msra.mxu0 0
    %366 = vmatprep.subr.bf16.mxu0 0
    %367 = vmatpush1.bf16.xpose.msra.mxu0 0
    %368 = vmatprep.subr.bf16.mxu0 0
    %369 = vmatpush1.bf16.xpose.msra.mxu0 0
    %370 = vmatprep.subr.bf16.mxu0 0
    %371 = vmatpush1.bf16.xpose.msra.mxu0 0
    %372 = vmatprep.subr.bf16.mxu0 0
    %373 = vmatpush1.bf16.xpose.msra.mxu0 0
    %374 = vmatprep.subr.bf16.mxu0 0
    %375 = vmatpush1.bf16.xpose.msra.mxu0 0
    %376 = vmatprep.subr.bf16.mxu0 0
    %377 = vmatpush1.bf16.xpose.msra.mxu0 0
    %378 = vmatprep.subr.bf16.mxu0 0
    %379 = vmatpush1.bf16.xpose.msra.mxu0 0
    %380 = vmatprep.subr.bf16.mxu0 0
    %381 = vmatpush1.bf16.xpose.msra.mxu0 0
    %382 = vmatprep.subr.bf16.mxu0 0
    %383 = vmatpush1.bf16.xpose.msra.mxu0 0
    %384 = vmatprep.subr.bf16.mxu0 0
    %385 = vmatpush1.bf16.xpose.msra.mxu0 0
    %386 = vmatprep.subr.bf16.mxu0 0
    %387 = vmatpush1.bf16.xpose.msra.mxu0 0
    %388 = vmatprep.subr.bf16.mxu0 0
    %389 = vmatpush1.bf16.xpose.msra.mxu0 0
    %390 = vmatprep.mubr.bf16.mxu0 0
    %391 = vmatmul.mubr.bf16.gmra.mrb[0].mxu0 %v353
    %v392 = vpop.f32.mrb[0].mxu0
    %v393 = vadd.f32 0.0, %v392
    %v394 = vpop.f32.mrb[0].mxu0
    %v395 = vpop.f32.mrb[0].mxu0
    %v396 = vpop.f32.mrb[0].mxu0
    %397 = vdwg.mxu0
    %v398 = vsel %vm123, %v393, -inf
    %399 = vmax.xlane.f32.xlu0 %v398
    %v400 = vpop.xlane.xlu0 %399
    %v401 = vsub.f32 %v393, %v400
    %v402 = vmul.f32 %v401, 1.442695
    %v403 = vpow.pop %v402
    %v404 = vsel %vm123, %v403, 0.0
    %405 = vadd.xlane.f32.xlu0 %v404
    %v406 = vpop.xlane.xlu0 %405
    %v407 = vrcp.pop %v406
    %v408 = vmul.f32 %v403, %v407
    %v409 = vpack.c.bf16 %v408, %v408
    %410 = vrot.lane.b32.xlu0 %v119, 48
    %v411 = vpop.permute.xlu0 %410
    %v413 = vsel %vm123, %v409, 0
    %v416 = vsel %vm187, %v411, 0
    %418 = vmatprep.subr.bf16.mxu0 0
    %419 = vmatpush1.bf16.msra.mxu0 %v416
    %420 = vmatprep.subr.bf16.mxu0 0
    %421 = vmatpush1.bf16.msra.mxu0 0
    %422 = vmatprep.subr.bf16.mxu0 0
    %423 = vmatpush1.bf16.msra.mxu0 0
    %424 = vmatprep.subr.bf16.mxu0 0
    %425 = vmatpush1.bf16.msra.mxu0 0
    %426 = vmatprep.subr.bf16.mxu0 0
    %427 = vmatpush1.bf16.msra.mxu0 0
    %428 = vmatprep.subr.bf16.mxu0 0
    %429 = vmatpush1.bf16.msra.mxu0 0
    %430 = vmatprep.subr.bf16.mxu0 0
    %431 = vmatpush1.bf16.msra.mxu0 0
    %432 = vmatprep.subr.bf16.mxu0 0
    %433 = vmatpush1.bf16.msra.mxu0 0
    %434 = vmatprep.subr.bf16.mxu0 0
    %435 = vmatpush1.bf16.msra.mxu0 0
    %436 = vmatprep.subr.bf16.mxu0 0
    %437 = vmatpush1.bf16.msra.mxu0 0
    %438 = vmatprep.subr.bf16.mxu0 0
    %439 = vmatpush1.bf16.msra.mxu0 0
    %440 = vmatprep.subr.bf16.mxu0 0
    %441 = vmatpush1.bf16.msra.mxu0 0
    %442 = vmatprep.subr.bf16.mxu0 0
    %443 = vmatpush1.bf16.msra.mxu0 0
    %444 = vmatprep.subr.bf16.mxu0 0
    %445 = vmatpush1.bf16.msra.mxu0 0
    %446 = vmatprep.subr.bf16.mxu0 0
    %447 = vmatpush1.bf16.msra.mxu0 0
    %448 = vmatprep.subr.bf16.mxu0 0
    %449 = vmatpush1.bf16.msra.mxu0 0
    %450 = vmatprep.mubr.bf16.mxu0 0
    %451 = vmatmul.mubr.bf16.gmra.mrb[0].mxu0 %v413
    %v452 = vpop.f32.mrb[0].mxu0
    %v453 = vadd.f32 0.0, %v452
    %v454 = vpop.f32.mrb[0].mxu0
    %v455 = vpop.f32.mrb[0].mxu0
    %v456 = vpop.f32.mrb[0].mxu0
    %457 = vdwg.mxu0
    %459 = vrot.lane.b32.xlu0 %v453, 16
    %v460 = vpop.permute.xlu0 %459
    %vm462 = vcmask 195712
    %463 = vst.msk [vmem:[#allocation7] sm:$0xff] %vm462, %v460
    %464 = vrot.lane.b32.xlu0 %v119, 104
    %v465 = vpop.permute.xlu0 %464
    %466 = vrot.lane.b32.xlu0 %v119, 72
    %v467 = vpop.permute.xlu0 %466
    %v469 = vsel %vm123, %v465, 0
    %v472 = vsel %vm123, %v467, 0
    %474 = vmatprep.subr.bf16.mxu0 0
    %475 = vmatpush1.bf16.xpose.msra.mxu0 %v472
    %476 = vmatprep.subr.bf16.mxu0 0
    %477 = vmatpush1.bf16.xpose.msra.mxu0 0
    %478 = vmatprep.subr.bf16.mxu0 0
    %479 = vmatpush1.bf16.xpose.msra.mxu0 0
    %480 = vmatprep.subr.bf16.mxu0 0
    %481 = vmatpush1.bf16.xpose.msra.mxu0 0
    %482 = vmatprep.subr.bf16.mxu0 0
    %483 = vmatpush1.bf16.xpose.msra.mxu0 0
    %484 = vmatprep.subr.bf16.mxu0 0
    %485 = vmatpush1.bf16.xpose.msra.mxu0 0
    %486 = vmatprep.subr.bf16.mxu0 0
    %487 = vmatpush1.bf16.xpose.msra.mxu0 0
    %488 = vmatprep.subr.bf16.mxu0 0
    %489 = vmatpush1.bf16.xpose.msra.mxu0 0
    %490 = vmatprep.subr.bf16.mxu0 0
    %491 = vmatpush1.bf16.xpose.msra.mxu0 0
    %492 = vmatprep.subr.bf16.mxu0 0
    %493 = vmatpush1.bf16.xpose.msra.mxu0 0
    %494 = vmatprep.subr.bf16.mxu0 0
    %495 = vmatpush1.bf16.xpose.msra.mxu0 0
    %496 = vmatprep.subr.bf16.mxu0 0
    %497 = vmatpush1.bf16.xpose.msra.mxu0 0
    %498 = vmatprep.subr.bf16.mxu0 0
    %499 = vmatpush1.bf16.xpose.msra.mxu0 0
    %500 = vmatprep.subr.bf16.mxu0 0
    %501 = vmatpush1.bf16.xpose.msra.mxu0 0
    %502 = vmatprep.subr.bf16.mxu0 0
    %503 = vmatpush1.bf16.xpose.msra.mxu0 0
    %504 = vmatprep.subr.bf16.mxu0 0
    %505 = vmatpush1.bf16.xpose.msra.mxu0 0
    %506 = vmatprep.mubr.bf16.mxu0 0
    %507 = vmatmul.mubr.bf16.gmra.mrb[0].mxu0 %v469
    %v508 = vpop.f32.mrb[0].mxu0
    %v509 = vadd.f32 0.0, %v508
    %v510 = vpop.f32.mrb[0].mxu0
    %v511 = vpop.f32.mrb[0].mxu0
    %v512 = vpop.f32.mrb[0].mxu0
    %513 = vdwg.mxu0
    %v514 = vsel %vm123, %v509, -inf
    %515 = vmax.xlane.f32.xlu0 %v514
    %v516 = vpop.xlane.xlu0 %515
    %v517 = vsub.f32 %v509, %v516
    %v518 = vmul.f32 %v517, 1.442695
    %v519 = vpow.pop %v518
    %v520 = vsel %vm123, %v519, 0.0
    %521 = vadd.xlane.f32.xlu0 %v520
    %v522 = vpop.xlane.xlu0 %521
    %v523 = vrcp.pop %v522
    %v524 = vmul.f32 %v519, %v523
    %v525 = vpack.c.bf16 %v524, %v524
    %526 = vrot.lane.b32.xlu0 %v119, 40
    %v527 = vpop.permute.xlu0 %526
    %v529 = vsel %vm123, %v525, 0
    %v532 = vsel %vm187, %v527, 0
    %534 = vmatprep.subr.bf16.mxu0 0
    %535 = vmatpush1.bf16.msra.mxu0 %v532
    %536 = vmatprep.subr.bf16.mxu0 0
    %537 = vmatpush1.bf16.msra.mxu0 0
    %538 = vmatprep.subr.bf16.mxu0 0
    %539 = vmatpush1.bf16.msra.mxu0 0
    %540 = vmatprep.subr.bf16.mxu0 0
    %541 = vmatpush1.bf16.msra.mxu0 0
    %542 = vmatprep.subr.bf16.mxu0 0
    %543 = vmatpush1.bf16.msra.mxu0 0
    %544 = vmatprep.subr.bf16.mxu0 0
    %545 = vmatpush1.bf16.msra.mxu0 0
    %546 = vmatprep.subr.bf16.mxu0 0
    %547 = vmatpush1.bf16.msra.mxu0 0
    %548 = vmatprep.subr.bf16.mxu0 0
    %549 = vmatpush1.bf16.msra.mxu0 0
    %550 = vmatprep.subr.bf16.mxu0 0
    %551 = vmatpush1.bf16.msra.mxu0 0
    %552 = vmatprep.subr.bf16.mxu0 0
    %553 = vmatpush1.bf16.msra.mxu0 0
    %554 = vmatprep.subr.bf16.mxu0 0
    %555 = vmatpush1.bf16.msra.mxu0 0
    %556 = vmatprep.subr.bf16.mxu0 0
    %557 = vmatpush1.bf16.msra.mxu0 0
    %558 = vmatprep.subr.bf16.mxu0 0
    %559 = vmatpush1.bf16.msra.mxu0 0
    %560 = vmatprep.subr.bf16.mxu0 0
    %561 = vmatpush1.bf16.msra.mxu0 0
    %562 = vmatprep.subr.bf16.mxu0 0
    %563 = vmatpush1.bf16.msra.mxu0 0
    %564 = vmatprep.subr.bf16.mxu0 0
    %565 = vmatpush1.bf16.msra.mxu0 0
    %566 = vmatprep.mubr.bf16.mxu0 0
    %567 = vmatmul.mubr.bf16.gmra.mrb[0].mxu0 %v529
    %v568 = vpop.f32.mrb[0].mxu0
    %v569 = vadd.f32 0.0, %v568
    %v570 = vpop.f32.mrb[0].mxu0
    %v571 = vpop.f32.mrb[0].mxu0
    %v572 = vpop.f32.mrb[0].mxu0
    %573 = vdwg.mxu0
    %575 = vrot.lane.b32.xlu0 %v569, 24
    %v576 = vpop.permute.xlu0 %575
    %vm578 = vcmask 261312
    %579 = vst.msk [vmem:[#allocation7] sm:$0xff] %vm578, %v576
    %v580 = vpack.c.bf16 %v116, %v116
    %582 = vrot.lane.b32.xlu0 %v580, 96
    %v583 = vpop.permute.xlu0 %582
    %v585 = vsel %vm123, %v580, 0
    %v588 = vsel %vm123, %v583, 0
    %590 = vmatprep.subr.bf16.mxu0 0
    %591 = vmatpush1.bf16.xpose.msra.mxu0 %v588
    %592 = vmatprep.subr.bf16.mxu0 0
    %593 = vmatpush1.bf16.xpose.msra.mxu0 0
    %594 = vmatprep.subr.bf16.mxu0 0
    %595 = vmatpush1.bf16.xpose.msra.mxu0 0
    %596 = vmatprep.subr.bf16.mxu0 0
    %597 = vmatpush1.bf16.xpose.msra.mxu0 0
    %598 = vmatprep.subr.bf16.mxu0 0
    %599 = vmatpush1.bf16.xpose.msra.mxu0 0
    %600 = vmatprep.subr.bf16.mxu0 0
    %601 = vmatpush1.bf16.xpose.msra.mxu0 0
    %602 = vmatprep.subr.bf16.mxu0 0
    %603 = vmatpush1.bf16.xpose.msra.mxu0 0
    %604 = vmatprep.subr.bf16.mxu0 0
    %605 = vmatpush1.bf16.xpose.msra.mxu0 0
    %606 = vmatprep.subr.bf16.mxu0 0
    %607 = vmatpush1.bf16.xpose.msra.mxu0 0
    %608 = vmatprep.subr.bf16.mxu0 0
    %609 = vmatpush1.bf16.xpose.msra.mxu0 0
    %610 = vmatprep.subr.bf16.mxu0 0
    %611 = vmatpush1.bf16.xpose.msra.mxu0 0
    %612 = vmatprep.subr.bf16.mxu0 0
    %613 = vmatpush1.bf16.xpose.msra.mxu0 0
    %614 = vmatprep.subr.bf16.mxu0 0
    %615 = vmatpush1.bf16.xpose.msra.mxu0 0
    %616 = vmatprep.subr.bf16.mxu0 0
    %617 = vmatpush1.bf16.xpose.msra.mxu0 0
    %618 = vmatprep.subr.bf16.mxu0 0
    %619 = vmatpush1.bf16.xpose.msra.mxu0 0
    %620 = vmatprep.subr.bf16.mxu0 0
    %621 = vmatpush1.bf16.xpose.msra.mxu0 0
    %622 = vmatprep.mubr.bf16.mxu0 0
    %623 = vmatmul.mubr.bf16.gmra.mrb[0].mxu0 %v585
    %v624 = vpop.f32.mrb[0].mxu0
    %v625 = vadd.f32 0.0, %v624
    %v626 = vpop.f32.mrb[0].mxu0
    %v627 = vpop.f32.mrb[0].mxu0
    %v628 = vpop.f32.mrb[0].mxu0
    %629 = vdwg.mxu0
    %v630 = vsel %vm123, %v625, -inf
    %631 = vmax.xlane.f32.xlu0 %v630
    %v632 = vpop.xlane.xlu0 %631
    %v633 = vsub.f32 %v625, %v632
    %v634 = vmul.f32 %v633, 1.442695
    %v635 = vpow.pop %v634
    %v636 = vsel %vm123, %v635, 0.0
    %637 = vadd.xlane.f32.xlu0 %v636
    %v638 = vpop.xlane.xlu0 %637
    %v639 = vrcp.pop %v638
    %v640 = vmul.f32 %v635, %v639
    %v641 = vpack.c.bf16 %v640, %v640
    %642 = vrot.lane.b32.xlu0 %v580, 64
    %v643 = vpop.permute.xlu0 %642
    %v645 = vsel %vm123, %v641, 0
    %v648 = vsel %vm187, %v643, 0
    %650 = vmatprep.subr.bf16.mxu0 0
    %651 = vmatpush1.bf16.msra.mxu0 %v648
    %652 = vmatprep.subr.bf16.mxu0 0
    %653 = vmatpush1.bf16.msra.mxu0 0
    %654 = vmatprep.subr.bf16.mxu0 0
    %655 = vmatpush1.bf16.msra.mxu0 0
    %656 = vmatprep.subr.bf16.mxu0 0
    %657 = vmatpush1.bf16.msra.mxu0 0
    %658 = vmatprep.subr.bf16.mxu0 0
    %659 = vmatpush1.bf16.msra.mxu0 0
    %660 = vmatprep.subr.bf16.mxu0 0
    %661 = vmatpush1.bf16.msra.mxu0 0
    %662 = vmatprep.subr.bf16.mxu0 0
    %663 = vmatpush1.bf16.msra.mxu0 0
    %664 = vmatprep.subr.bf16.mxu0 0
    %665 = vmatpush1.bf16.msra.mxu0 0
    %666 = vmatprep.subr.bf16.mxu0 0
    %667 = vmatpush1.bf16.msra.mxu0 0
    %668 = vmatprep.subr.bf16.mxu0 0
    %669 = vmatpush1.bf16.msra.mxu0 0
    %670 = vmatprep.subr.bf16.mxu0 0
    %671 = vmatpush1.bf16.msra.mxu0 0
    %672 = vmatprep.subr.bf16.mxu0 0
    %673 = vmatpush1.bf16.msra.mxu0 0
    %674 = vmatprep.subr.bf16.mxu0 0
    %675 = vmatpush1.bf16.msra.mxu0 0
    %676 = vmatprep.subr.bf16.mxu0 0
    %677 = vmatpush1.bf16.msra.mxu0 0
    %678 = vmatprep.subr.bf16.mxu0 0
    %679 = vmatpush1.bf16.msra.mxu0 0
    %680 = vmatprep.subr.bf16.mxu0 0
    %681 = vmatpush1.bf16.msra.mxu0 0
    %682 = vmatprep.mubr.bf16.mxu0 0
    %683 = vmatmul.mubr.bf16.gmra.mrb[0].mxu0 %v645
    %v684 = vpop.f32.mrb[0].mxu0
    %v685 = vadd.f32 0.0, %v684
    %v686 = vpop.f32.mrb[0].mxu0
    %v687 = vpop.f32.mrb[0].mxu0
    %v688 = vpop.f32.mrb[0].mxu0
    %689 = vdwg.mxu0
    %s690 = scalar_lea.vmem [#allocation7], 8
    %691 = vst.msk [vmem:[%s690] sm:$0xff] %vm123, %v685
    %692 = vrot.lane.b32.xlu0 %v580, 120
    %v693 = vpop.permute.xlu0 %692
    %694 = vrot.lane.b32.xlu0 %v580, 88
    %v695 = vpop.permute.xlu0 %694
    %v697 = vsel %vm123, %v693, 0
    %v700 = vsel %vm123, %v695, 0
    %702 = vmatprep.subr.bf16.mxu0 0
    %703 = vmatpush1.bf16.xpose.msra.mxu0 %v700
    %704 = vmatprep.subr.bf16.mxu0 0
    %705 = vmatpush1.bf16.xpose.msra.mxu0 0
    %706 = vmatprep.subr.bf16.mxu0 0
    %707 = vmatpush1.bf16.xpose.msra.mxu0 0
    %708 = vmatprep.subr.bf16.mxu0 0
    %709 = vmatpush1.bf16.xpose.msra.mxu0 0
    %710 = vmatprep.subr.bf16.mxu0 0
    %711 = vmatpush1.bf16.xpose.msra.mxu0 0
    %712 = vmatprep.subr.bf16.mxu0 0
    %713 = vmatpush1.bf16.xpose.msra.mxu0 0
    %714 = vmatprep.subr.bf16.mxu0 0
    %715 = vmatpush1.bf16.xpose.msra.mxu0 0
    %716 = vmatprep.subr.bf16.mxu0 0
    %717 = vmatpush1.bf16.xpose.msra.mxu0 0
    %718 = vmatprep.subr.bf16.mxu0 0
    %719 = vmatpush1.bf16.xpose.msra.mxu0 0
    %720 = vmatprep.subr.bf16.mxu0 0
    %721 = vmatpush1.bf16.xpose.msra.mxu0 0
    %722 = vmatprep.subr.bf16.mxu0 0
    %723 = vmatpush1.bf16.xpose.msra.mxu0 0
    %724 = vmatprep.subr.bf16.mxu0 0
    %725 = vmatpush1.bf16.xpose.msra.mxu0 0
    %726 = vmatprep.subr.bf16.mxu0 0
    %727 = vmatpush1.bf16.xpose.msra.mxu0 0
    %728 = vmatprep.subr.bf16.mxu0 0
    %729 = vmatpush1.bf16.xpose.msra.mxu0 0
    %730 = vmatprep.subr.bf16.mxu0 0
    %731 = vmatpush1.bf16.xpose.msra.mxu0 0
    %732 = vmatprep.subr.bf16.mxu0 0
    %733 = vmatpush1.bf16.xpose.msra.mxu0 0
    %734 = vmatprep.mubr.bf16.mxu0 0
    %735 = vmatmul.mubr.bf16.gmra.mrb[0].mxu0 %v697
    %v736 = vpop.f32.mrb[0].mxu0
    %v737 = vadd.f32 0.0, %v736
    %v738 = vpop.f32.mrb[0].mxu0
    %v739 = vpop.f32.mrb[0].mxu0
    %v740 = vpop.f32.mrb[0].mxu0
    %741 = vdwg.mxu0
    %v742 = vsel %vm123, %v737, -inf
    %743 = vmax.xlane.f32.xlu0 %v742
    %v744 = vpop.xlane.xlu0 %743
    %v745 = vsub.f32 %v737, %v744
    %v746 = vmul.f32 %v745, 1.442695
    %v747 = vpow.pop %v746
    %v748 = vsel %vm123, %v747, 0.0
    %749 = vadd.xlane.f32.xlu0 %v748
    %v750 = vpop.xlane.xlu0 %749
    %v751 = vrcp.pop %v750
    %v752 = vmul.f32 %v747, %v751
    %v753 = vpack.c.bf16 %v752, %v752
    %754 = vrot.lane.b32.xlu0 %v580, 56
    %v755 = vpop.permute.xlu0 %754
    %v757 = vsel %vm123, %v753, 0
    %v760 = vsel %vm187, %v755, 0
    %762 = vmatprep.subr.bf16.mxu0 0
    %763 = vmatpush1.bf16.msra.mxu0 %v760
    %764 = vmatprep.subr.bf16.mxu0 0
    %765 = vmatpush1.bf16.msra.mxu0 0
    %766 = vmatprep.subr.bf16.mxu0 0
    %767 = vmatpush1.bf16.msra.mxu0 0
    %768 = vmatprep.subr.bf16.mxu0 0
    %769 = vmatpush1.bf16.msra.mxu0 0
    %770 = vmatprep.subr.bf16.mxu0 0
    %771 = vmatpush1.bf16.msra.mxu0 0
    %772 = vmatprep.subr.bf16.mxu0 0
    %773 = vmatpush1.bf16.msra.mxu0 0
    %774 = vmatprep.subr.bf16.mxu0 0
    %775 = vmatpush1.bf16.msra.mxu0 0
    %776 = vmatprep.subr.bf16.mxu0 0
    %777 = vmatpush1.bf16.msra.mxu0 0
    %778 = vmatprep.subr.bf16.mxu0 0
    %779 = vmatpush1.bf16.msra.mxu0 0
    %780 = vmatprep.subr.bf16.mxu0 0
    %781 = vmatpush1.bf16.msra.mxu0 0
    %782 = vmatprep.subr.bf16.mxu0 0
    %783 = vmatpush1.bf16.msra.mxu0 0
    %784 = vmatprep.subr.bf16.mxu0 0
    %785 = vmatpush1.bf16.msra.mxu0 0
    %786 = vmatprep.subr.bf16.mxu0 0
    %787 = vmatpush1.bf16.msra.mxu0 0
    %788 = vmatprep.subr.bf16.mxu0 0
    %789 = vmatpush1.bf16.msra.mxu0 0
    %790 = vmatprep.subr.bf16.mxu0 0
    %791 = vmatpush1.bf16.msra.mxu0 0
    %792 = vmatprep.subr.bf16.mxu0 0
    %793 = vmatpush1.bf16.msra.mxu0 0
    %794 = vmatprep.mubr.bf16.mxu0 0
    %795 = vmatmul.mubr.bf16.gmra.mrb[0].mxu0 %v757
    %v796 = vpop.f32.mrb[0].mxu0
    %v797 = vadd.f32 0.0, %v796
    %v798 = vpop.f32.mrb[0].mxu0
    %v799 = vpop.f32.mrb[0].mxu0
    %v800 = vpop.f32.mrb[0].mxu0
    %801 = vdwg.mxu0
    %803 = vrot.lane.b32.xlu0 %v797, 8
    %v804 = vpop.permute.xlu0 %803
    %806 = vst.msk [vmem:[%s690] sm:$0xff] %vm346, %v804
    %807 = vrot.lane.b32.xlu0 %v580, 112
    %v808 = vpop.permute.xlu0 %807
    %809 = vrot.lane.b32.xlu0 %v580, 80
    %v810 = vpop.permute.xlu0 %809
    %v812 = vsel %vm123, %v808, 0
    %v815 = vsel %vm123, %v810, 0
    %817 = vmatprep.subr.bf16.mxu0 0
    %818 = vmatpush1.bf16.xpose.msra.mxu0 %v815
    %819 = vmatprep.subr.bf16.mxu0 0
    %820 = vmatpush1.bf16.xpose.msra.mxu0 0
    %821 = vmatprep.subr.bf16.mxu0 0
    %822 = vmatpush1.bf16.xpose.msra.mxu0 0
    %823 = vmatprep.subr.bf16.mxu0 0
    %824 = vmatpush1.bf16.xpose.msra.mxu0 0
    %825 = vmatprep.subr.bf16.mxu0 0
    %826 = vmatpush1.bf16.xpose.msra.mxu0 0
    %827 = vmatprep.subr.bf16.mxu0 0
    %828 = vmatpush1.bf16.xpose.msra.mxu0 0
    %829 = vmatprep.subr.bf16.mxu0 0
    %830 = vmatpush1.bf16.xpose.msra.mxu0 0
    %831 = vmatprep.subr.bf16.mxu0 0
    %832 = vmatpush1.bf16.xpose.msra.mxu0 0
    %833 = vmatprep.subr.bf16.mxu0 0
    %834 = vmatpush1.bf16.xpose.msra.mxu0 0
    %835 = vmatprep.subr.bf16.mxu0 0
    %836 = vmatpush1.bf16.xpose.msra.mxu0 0
    %837 = vmatprep.subr.bf16.mxu0 0
    %838 = vmatpush1.bf16.xpose.msra.mxu0 0
    %839 = vmatprep.subr.bf16.mxu0 0
    %840 = vmatpush1.bf16.xpose.msra.mxu0 0
    %841 = vmatprep.subr.bf16.mxu0 0
    %842 = vmatpush1.bf16.xpose.msra.mxu0 0
    %843 = vmatprep.subr.bf16.mxu0 0
    %844 = vmatpush1.bf16.xpose.msra.mxu0 0
    %845 = vmatprep.subr.bf16.mxu0 0
    %846 = vmatpush1.bf16.xpose.msra.mxu0 0
    %847 = vmatprep.subr.bf16.mxu0 0
    %848 = vmatpush1.bf16.xpose.msra.mxu0 0
    %849 = vmatprep.mubr.bf16.mxu0 0
    %850 = vmatmul.mubr.bf16.gmra.mrb[0].mxu0 %v812
    %v851 = vpop.f32.mrb[0].mxu0
    %v852 = vadd.f32 0.0, %v851
    %v853 = vpop.f32.mrb[0].mxu0
    %v854 = vpop.f32.mrb[0].mxu0
    %v855 = vpop.f32.mrb[0].mxu0
    %856 = vdwg.mxu0
    %v857 = vsel %vm123, %v852, -inf
    %858 = vmax.xlane.f32.xlu0 %v857
    %v859 = vpop.xlane.xlu0 %858
    %v860 = vsub.f32 %v852, %v859
    %v861 = vmul.f32 %v860, 1.442695
    %v862 = vpow.pop %v861
    %v863 = vsel %vm123, %v862, 0.0
    %864 = vadd.xlane.f32.xlu0 %v863
    %v865 = vpop.xlane.xlu0 %864
    %v866 = vrcp.pop %v865
    %v867 = vmul.f32 %v862, %v866
    %v868 = vpack.c.bf16 %v867, %v867
    %869 = vrot.lane.b32.xlu0 %v580, 48
    %v870 = vpop.permute.xlu0 %869
    %v872 = vsel %vm123, %v868, 0
    %v875 = vsel %vm187, %v870, 0
    %877 = vmatprep.subr.bf16.mxu0 0
    %878 = vmatpush1.bf16.msra.mxu0 %v875
    %879 = vmatprep.subr.bf16.mxu0 0
    %880 = vmatpush1.bf16.msra.mxu0 0
    %881 = vmatprep.subr.bf16.mxu0 0
    %882 = vmatpush1.bf16.msra.mxu0 0
    %883 = vmatprep.subr.bf16.mxu0 0
    %884 = vmatpush1.bf16.msra.mxu0 0
    %885 = vmatprep.subr.bf16.mxu0 0
    %886 = vmatpush1.bf16.msra.mxu0 0
    %887 = vmatprep.subr.bf16.mxu0 0
    %888 = vmatpush1.bf16.msra.mxu0 0
    %889 = vmatprep.subr.bf16.mxu0 0
    %890 = vmatpush1.bf16.msra.mxu0 0
    %891 = vmatprep.subr.bf16.mxu0 0
    %892 = vmatpush1.bf16.msra.mxu0 0
    %893 = vmatprep.subr.bf16.mxu0 0
    %894 = vmatpush1.bf16.msra.mxu0 0
    %895 = vmatprep.subr.bf16.mxu0 0
    %896 = vmatpush1.bf16.msra.mxu0 0
    %897 = vmatprep.subr.bf16.mxu0 0
    %898 = vmatpush1.bf16.msra.mxu0 0
    %899 = vmatprep.subr.bf16.mxu0 0
    %900 = vmatpush1.bf16.msra.mxu0 0
    %901 = vmatprep.subr.bf16.mxu0 0
    %902 = vmatpush1.bf16.msra.mxu0 0
    %903 = vmatprep.subr.bf16.mxu0 0
    %904 = vmatpush1.bf16.msra.mxu0 0
    %905 = vmatprep.subr.bf16.mxu0 0
    %906 = vmatpush1.bf16.msra.mxu0 0
    %907 = vmatprep.subr.bf16.mxu0 0
    %908 = vmatpush1.bf16.msra.mxu0 0
    %909 = vmatprep.mubr.bf16.mxu0 0
    %910 = vmatmul.mubr.bf16.gmra.mrb[0].mxu0 %v872
    %v911 = vpop.f32.mrb[0].mxu0
    %v912 = vadd.f32 0.0, %v911
    %v913 = vpop.f32.mrb[0].mxu0
    %v914 = vpop.f32.mrb[0].mxu0
    %v915 = vpop.f32.mrb[0].mxu0
    %916 = vdwg.mxu0
    %918 = vrot.lane.b32.xlu0 %v912, 16
    %v919 = vpop.permute.xlu0 %918
    %921 = vst.msk [vmem:[%s690] sm:$0xff] %vm462, %v919
    %922 = vrot.lane.b32.xlu0 %v580, 104
    %v923 = vpop.permute.xlu0 %922
    %924 = vrot.lane.b32.xlu0 %v580, 72
    %v925 = vpop.permute.xlu0 %924
    %v927 = vsel %vm123, %v923, 0
    %v930 = vsel %vm123, %v925, 0
    %932 = vmatprep.subr.bf16.mxu0 0
    %933 = vmatpush1.bf16.xpose.msra.mxu0 %v930
    %934 = vmatprep.subr.bf16.mxu0 0
    %935 = vmatpush1.bf16.xpose.msra.mxu0 0
    %936 = vmatprep.subr.bf16.mxu0 0
    %937 = vmatpush1.bf16.xpose.msra.mxu0 0
    %938 = vmatprep.subr.bf16.mxu0 0
    %939 = vmatpush1.bf16.xpose.msra.mxu0 0
    %940 = vmatprep.subr.bf16.mxu0 0
    %941 = vmatpush1.bf16.xpose.msra.mxu0 0
    %942 = vmatprep.subr.bf16.mxu0 0
    %943 = vmatpush1.bf16.xpose.msra.mxu0 0
    %944 = vmatprep.subr.bf16.mxu0 0
    %945 = vmatpush1.bf16.xpose.msra.mxu0 0
    %946 = vmatprep.subr.bf16.mxu0 0
    %947 = vmatpush1.bf16.xpose.msra.mxu0 0
    %948 = vmatprep.subr.bf16.mxu0 0
    %949 = vmatpush1.bf16.xpose.msra.mxu0 0
    %950 = vmatprep.subr.bf16.mxu0 0
    %951 = vmatpush1.bf16.xpose.msra.mxu0 0
    %952 = vmatprep.subr.bf16.mxu0 0
    %953 = vmatpush1.bf16.xpose.msra.mxu0 0
    %954 = vmatprep.subr.bf16.mxu0 0
    %955 = vmatpush1.bf16.xpose.msra.mxu0 0
    %956 = vmatprep.subr.bf16.mxu0 0
    %957 = vmatpush1.bf16.xpose.msra.mxu0 0
    %958 = vmatprep.subr.bf16.mxu0 0
    %959 = vmatpush1.bf16.xpose.msra.mxu0 0
    %960 = vmatprep.subr.bf16.mxu0 0
    %961 = vmatpush1.bf16.xpose.msra.mxu0 0
    %962 = vmatprep.subr.bf16.mxu0 0
    %963 = vmatpush1.bf16.xpose.msra.mxu0 0
    %964 = vmatprep.mubr.bf16.mxu0 0
    %965 = vmatmul.mubr.bf16.gmra.mrb[0].mxu0 %v927
    %v966 = vpop.f32.mrb[0].mxu0
    %v967 = vadd.f32 0.0, %v966
    %v968 = vpop.f32.mrb[0].mxu0
    %v969 = vpop.f32.mrb[0].mxu0
    %v970 = vpop.f32.mrb[0].mxu0
    %971 = vdwg.mxu0
    %v972 = vsel %vm123, %v967, -inf
    %973 = vmax.xlane.f32.xlu0 %v972
    %v974 = vpop.xlane.xlu0 %973
    %v975 = vsub.f32 %v967, %v974
    %v976 = vmul.f32 %v975, 1.442695
    %v977 = vpow.pop %v976
    %v978 = vsel %vm123, %v977, 0.0
    %979 = vadd.xlane.f32.xlu0 %v978
    %v980 = vpop.xlane.xlu0 %979
    %v981 = vrcp.pop %v980
    %v982 = vmul.f32 %v977, %v981
    %v983 = vpack.c.bf16 %v982, %v982
    %984 = vrot.lane.b32.xlu0 %v580, 40
    %v985 = vpop.permute.xlu0 %984
    %v987 = vsel %vm123, %v983, 0
    %v990 = vsel %vm187, %v985, 0
    %992 = vmatprep.subr.bf16.mxu0 0
    %993 = vmatpush1.bf16.msra.mxu0 %v990
    %994 = vmatprep.subr.bf16.mxu0 0
    %995 = vmatpush1.bf16.msra.mxu0 0
    %996 = vmatprep.subr.bf16.mxu0 0
    %997 = vmatpush1.bf16.msra.mxu0 0
    %998 = vmatprep.subr.bf16.mxu0 0
    %999 = vmatpush1.bf16.msra.mxu0 0
    %1000 = vmatprep.subr.bf16.mxu0 0
    %1001 = vmatpush1.bf16.msra.mxu0 0
    %1002 = vmatprep.subr.bf16.mxu0 0
    %1003 = vmatpush1.bf16.msra.mxu0 0
    %1004 = vmatprep.subr.bf16.mxu0 0
    %1005 = vmatpush1.bf16.msra.mxu0 0
    %1006 = vmatprep.subr.bf16.mxu0 0
    %1007 = vmatpush1.bf16.msra.mxu0 0
    %1008 = vmatprep.subr.bf16.mxu0 0
    %1009 = vmatpush1.bf16.msra.mxu0 0
    %1010 = vmatprep.subr.bf16.mxu0 0
    %1011 = vmatpush1.bf16.msra.mxu0 0
    %1012 = vmatprep.subr.bf16.mxu0 0
    %1013 = vmatpush1.bf16.msra.mxu0 0
    %1014 = vmatprep.subr.bf16.mxu0 0
    %1015 = vmatpush1.bf16.msra.mxu0 0
    %1016 = vmatprep.subr.bf16.mxu0 0
    %1017 = vmatpush1.bf16.msra.mxu0 0
    %1018 = vmatprep.subr.bf16.mxu0 0
    %1019 = vmatpush1.bf16.msra.mxu0 0
    %1020 = vmatprep.subr.bf16.mxu0 0
    %1021 = vmatpush1.bf16.msra.mxu0 0
    %1022 = vmatprep.subr.bf16.mxu0 0
    %1023 = vmatpush1.bf16.msra.mxu0 0
    %1024 = vmatprep.mubr.bf16.mxu0 0
    %1025 = vmatmul.mubr.bf16.gmra.mrb[0].mxu0 %v987
    %v1026 = vpop.f32.mrb[0].mxu0
    %v1027 = vadd.f32 0.0, %v1026
    %v1028 = vpop.f32.mrb[0].mxu0
    %v1029 = vpop.f32.mrb[0].mxu0
    %v1030 = vpop.f32.mrb[0].mxu0
    %1031 = vdwg.mxu0
    %1033 = vrot.lane.b32.xlu0 %v1027, 24
    %v1034 = vpop.permute.xlu0 %1033
    %1036 = vst.msk [vmem:[%s690] sm:$0xff] %vm578, %v1034
    // Predicated region
    $region22: #{tpu_custom_call.1} parent=1 // pred_check
      _
    $region23: #{tpu_custom_call.1} parent=1 // pred_check_branch
      %1038 = sbr.rel (0) target = $region25
    $region24: #{tpu_custom_call.1} parent=1 // pred_region
      %s1040 = ssub.s32 256, 256
      %1041 = vsyncadd [#allocation4], %s1040
      %s1042 = sshll.u32 [#allocation7], 4
      %s1043 = int_to_ptr.vmem [resolvable:$true] %s1042
      %1048 = dma.vmem_to_hbm [thread:$0]  %s1043, 256, %s3, [#allocation4], 128, 128, 8
    $region25: #{tpu_custom_call.1} parent=1 // pred_fallthru
      _
    // Predicated region
    $region26: #{tpu_custom_call.1} parent=1 // pred_check
      _
    $region27: #{tpu_custom_call.1} parent=1 // pred_check_branch
      %1050 = sbr.rel (0) target = $region29
    $region28: #{tpu_custom_call.1} parent=1 // pred_region
      %1051 = dma.done [#allocation4], 256
    $region29: #{tpu_custom_call.1} parent=1 // pred_fallthru
      _
    %1052 = vsyncpa [#allocation3], 1
    %1053 = vsyncpa [#allocation6], 1
    %1054 = vsyncpa [#allocation4], 1

</llo_original>
